<compile_context>
chip_gen: v5e
topology: v5e:2x2
jax: 0.10.0
libtpu: 0.0.40
codegen_flags: <defaults>
</compile_context>

<pallas_src>
import jax
import jax.numpy as jnp
from jax import lax
from jax.experimental import pallas as pl
from jax.experimental.pallas import tpu as pltpu

CUTOFF = 4.0        # `cutoff` hyper-parameter of the (unavailable) MPNN
N_SPECIES = 4       # size of the atom_species embedding table
LANES = 128
SUBLANES = 8
PAIR_ALIGN = SUBLANES * LANES   # 1024: pair tiles are (8, TP/8)-dense
MAX_PAIR_TILE = 2048            # pairs per grid step


def pes_kernel(params_ref, cart_ref, spec_ref, nei_ref, shifts_ref, out_ref):
    """One grid step = one tile of TP pairs -> one partial-energy output tile."""
    N = cart_ref.shape[1]           # atoms (lane axis of the atom table)
    TP = shifts_ref.shape[1]        # pairs in this tile (multiple of 1024)
    TL = TP // SUBLANES             # lanes of the densified (8, TL) pair tiles
    S = params_ref.shape[0] - 18    # number of species embeddings

    # --- exact PES.forward geometry; the 3x3 algebra is SMEM scalar math ----
    cell = [[params_ref[3 * j + k] for k in range(3)] for j in range(3)]
    disp = [[params_ref[9 + 3 * j + k] for k in range(3)] for j in range(3)]
    # symm_cell = (disp_cell + disp_cell.T) / 2
    symm = [[(disp[j][k] + disp[k][j]) * 0.5 for k in range(3)] for j in range(3)]
    # cell2 = cell + cell @ symm_cell
    cell2 = [[cell[j][k]
              + cell[j][0] * symm[0][k]
              + cell[j][1] * symm[1][k]
              + cell[j][2] * symm[2][k]
              for k in range(3)] for j in range(3)]

    # cart2 = cart + cart @ symm_cell   (transposed layout: atoms on lanes)
    cart = cart_ref[...]                                 # (3, N)
    cx, cy, cz = cart[0:1, :], cart[1:2, :], cart[2:3, :]
    c2x = cx + symm[0][0] * cx + symm[1][0] * cy + symm[2][0] * cz
    c2y = cy + symm[0][1] * cx + symm[1][1] * cy + symm[2][1] * cz
    c2z = cz + symm[0][2] * cx + symm[1][2] * cy + symm[2][2] * cz

    # shifts2 = shifts @ cell2   (transposed layout: pairs on lanes)
    sh = shifts_ref[...]                                 # (3, TP)
    sx, sy, sz = sh[0:1, :], sh[1:2, :], sh[2:3, :]
    s2x = cell2[0][0] * sx + cell2[1][0] * sy + cell2[2][0] * sz
    s2y = cell2[0][1] * sx + cell2[1][1] * sy + cell2[2][1] * sz
    s2z = cell2[0][2] * sx + cell2[1][2] * sy + cell2[2][2] * sz
    s2 = jnp.concatenate([s2x, s2y, s2z], axis=0)        # (3, TP)

    # --- surrogate MPNN energy (TODO(synk): real MPNN source unavailable) ---
    # per-atom species weight (center_factor / neigh_factor are all-ones)
    spec = spec_ref[...]                                 # (1, N) int32
    atom_w = jnp.zeros((1, N), jnp.float32)
    for s in range(S):                                   # S tiny -> unrolled
        atom_w = atom_w + params_ref[18 + s] * (spec == s).astype(jnp.float32)

    # fused one-hot gather: one (8, N) @ (N, 2*TP) MXU push.  LHS rows are
    # [x, y, z, w, 0, 0, 0, 0] so the result tile is sublane-full.  i-indices
    # occupy lanes [0, TP), j-indices lanes [TP, 2TP); padded pairs carry
    # index -1 -> all-zero one-hot column -> exactly zero contribution.
    lhs = jnp.concatenate([c2x, c2y, c2z, atom_w,
                           jnp.zeros((4, N), jnp.float32)], axis=0)    # (8, N)
    nei = nei_ref[...]                                                 # (2, TP)
    nei_row = jnp.concatenate([nei[0:1, :], nei[1:2, :]], axis=1)      # (1, 2TP)
    atom_ids = lax.broadcasted_iota(jnp.int32, (N, 2 * TP), 0)
    onehot = (nei_row == atom_ids).astype(jnp.float32)                 # (N, 2TP)
    gath = jnp.dot(lhs, onehot, preferred_element_type=jnp.float32)    # (8, 2TP)

    # displacement as one (3, TP) block; weights product as one row
    d = gath[0:3, TP:] - gath[0:3, :TP] + s2                           # (3, TP)
    ww = gath[3:4, :TP] * gath[3:4, TP:]                               # (1, TP)
    dsq = d * d
    r2 = dsq[0:1, :] + dsq[1:2, :] + dsq[2:3, :]                       # (1, TP)

    # densify the pair axis over sublanes: (1, TP) -> (8, TL) so the
    # transcendental epilogue runs at full vreg occupancy (8x denser).
    def densify(row):
        return jnp.concatenate(
            [row[:, k * TL:(k + 1) * TL] for k in range(SUBLANES)], axis=0)

    r2d = densify(r2)                                                  # (8, TL)
    wwd = densify(ww)                                                  # (8, TL)

    r = jnp.sqrt(r2d + 1e-12)
    # polynomial cutoff (replaces cos cutoff; no EUP cos on TPU)
    t = jnp.maximum(1.0 - r2d * (1.0 / (CUTOFF * CUTOFF)), 0.0)
    fc = t * t
    # padded lanes have ww == 0 -> contribute exactly zero energy
    pair_e = wwd * fc * jnp.exp(-r)                                    # (8, TL)

    # per-row lane reduction; broadcast across lanes so the output tile is a
    # full, unmasked (8, 128) store.  Wrapper sums column 0 of every tile.
    row_sum = jnp.sum(pair_e, axis=1, keepdims=True)                   # (8, 1)
    out_ref[...] = jnp.broadcast_to(row_sum, (SUBLANES, LANES))


def pes_forward(cell, disp_cell, cart, neigh_list, shifts, species, emb_w):
    N = cart.shape[0]
    M = shifts.shape[0]

    # pair tile: multiple of 1024 (8 sublanes x 128 lanes), capped for VMEM
    TP = min(MAX_PAIR_TILE, pl.cdiv(max(M, 1), PAIR_ALIGN) * PAIR_ALIGN)
    Mp = pl.cdiv(max(M, 1), TP) * TP
    num_tiles = Mp // TP

    # layout glue: transpose to lane-dense layout, pad the pair axis, pack the
    # tiny scalar operands (cell / disp_cell / species embedding) into SMEM.
    cart_t = jnp.asarray(cart, jnp.float32).T                          # (3, N)
    shifts_t = jnp.pad(jnp.asarray(shifts, jnp.float32).T,
                       ((0, 0), (0, Mp - M)))                          # (3, Mp)
    nei = jnp.pad(jnp.asarray(neigh_list, jnp.int32),
                  ((0, 0), (0, Mp - M)), constant_values=-1)           # (2, Mp)
    spec_row = jnp.asarray(species, jnp.int32).reshape(1, N)
    params = jnp.concatenate([jnp.asarray(cell, jnp.float32).reshape(-1),
                              jnp.asarray(disp_cell, jnp.float32).reshape(-1),
                              jnp.asarray(emb_w, jnp.float32).reshape(-1)])

    # explicit scoped-VMEM budget (one-hot + gather + double-buffered tiles)
    est = 4 * (N * 2 * TP + 8 * 2 * TP + 2 * (3 + 3 + 2) * TP
               + 8 * N + 2 * SUBLANES * LANES)
    vmem_limit = int(min(max(4 * est, 32 * 1024 * 1024), 56 * 1024 * 1024))

    smem = pl.BlockSpec(memory_space=pltpu.MemorySpace.SMEM)

    partials = pl.pallas_call(
        pes_kernel,
        out_shape=jax.ShapeDtypeStruct((num_tiles * SUBLANES, LANES), jnp.float32),
        grid=(num_tiles,),
        in_specs=[
            smem,                                              # params (SMEM)
            pl.BlockSpec((3, N), lambda p: (0, 0)),            # cart  (resident)
            pl.BlockSpec((1, N), lambda p: (0, 0)),            # species (resident)
            pl.BlockSpec((2, TP), lambda p: (0, p)),           # nei tile
            pl.BlockSpec((3, TP), lambda p: (0, p)),           # shifts tile
        ],
        out_specs=pl.BlockSpec((SUBLANES, LANES), lambda p: (p, 0)),
        compiler_params=pltpu.CompilerParams(
            dimension_semantics=("parallel",),
            vmem_limit_bytes=vmem_limit),
    )(params, cart_t, spec_row, nei, shifts_t)

    # column 0 of each output tile holds the per-sublane partial sums
    return jnp.sum(partials[:, 0])


if __name__ == "__main__":
    key = jax.random.PRNGKey(0)
    k_cart, k_disp, k_cellnoise, k_nei, k_shift, k_spec = jax.random.split(key, 6)

    natoms = 16
    npairs = 32

    cart = jax.random.normal(k_cart, (natoms, 3), jnp.float32) * 2.0
    cell = (jnp.eye(3, dtype=jnp.float32) * 6.0
            + 0.05 * jax.random.normal(k_cellnoise, (3, 3), jnp.float32))
    disp_cell = 0.01 * jax.random.normal(k_disp, (3, 3), jnp.float32)
    neigh_list = jax.random.randint(k_nei, (2, npairs), 0, natoms, jnp.int32)
    shifts = jax.random.randint(k_shift, (npairs, 3), -1, 2, jnp.int32).astype(jnp.float32)
    species = jax.random.randint(k_spec, (natoms,), 0, N_SPECIES, jnp.int32)

    # deterministic synthetic species-embedding weights
    emb_w = jnp.linspace(0.5, 1.5, N_SPECIES, dtype=jnp.float32).reshape(N_SPECIES, 1)

    energy = pes_forward(cell, disp_cell, cart, neigh_list, shifts, species, emb_w)
    jax.block_until_ready(energy)
    print("KERNEL_OK")
</pallas_src>

<mosaic_0001>
module attributes {stable_mosaic.version = 11 : i64} {
  func.func @pes_kernel(%arg0: i32, %arg1: memref<22xf32, #tpu.memory_space<smem>>, %arg2: memref<3x16xf32, #tpu.memory_space<vmem>>, %arg3: memref<1x16xi32, #tpu.memory_space<vmem>>, %arg4: memref<2x1024xi32, #tpu.memory_space<vmem>>, %arg5: memref<3x1024xf32, #tpu.memory_space<vmem>>, %arg6: memref<8x128xf32, #tpu.memory_space<vmem>>) attributes {dimension_semantics = [#tpu.dimension_semantics<parallel>], iteration_bounds = array<i64: 1>, scalar_prefetch = 0 : i64, scratch_operands = 0 : i64, tpu.core_type = #tpu.core_type<tc>, window_params = [{transform_indices = @transform_0, window_bounds = array<i64: 22>}, {pipeline_mode = #tpu.pipeline_mode<synchronous>, transform_indices = @transform_1, window_bounds = array<i64: 3, 16>}, {pipeline_mode = #tpu.pipeline_mode<synchronous>, transform_indices = @transform_2, window_bounds = array<i64: 1, 16>}, {transform_indices = @transform_3, window_bounds = array<i64: 2, 1024>}, {transform_indices = @transform_4, window_bounds = array<i64: 3, 1024>}, {transform_indices = @transform_5, window_bounds = array<i64: 8, 128>}]} {
    %c0 = arith.constant 0 : index
    %0 = memref.load %arg1[%c0] : memref<22xf32, #tpu.memory_space<smem>>
    %c1 = arith.constant 1 : index
    %1 = memref.load %arg1[%c1] : memref<22xf32, #tpu.memory_space<smem>>
    %c2 = arith.constant 2 : index
    %2 = memref.load %arg1[%c2] : memref<22xf32, #tpu.memory_space<smem>>
    %c3 = arith.constant 3 : index
    %3 = memref.load %arg1[%c3] : memref<22xf32, #tpu.memory_space<smem>>
    %c4 = arith.constant 4 : index
    %4 = memref.load %arg1[%c4] : memref<22xf32, #tpu.memory_space<smem>>
    %c5 = arith.constant 5 : index
    %5 = memref.load %arg1[%c5] : memref<22xf32, #tpu.memory_space<smem>>
    %c6 = arith.constant 6 : index
    %6 = memref.load %arg1[%c6] : memref<22xf32, #tpu.memory_space<smem>>
    %c7 = arith.constant 7 : index
    %7 = memref.load %arg1[%c7] : memref<22xf32, #tpu.memory_space<smem>>
    %c8 = arith.constant 8 : index
    %8 = memref.load %arg1[%c8] : memref<22xf32, #tpu.memory_space<smem>>
    %c9 = arith.constant 9 : index
    %9 = memref.load %arg1[%c9] : memref<22xf32, #tpu.memory_space<smem>>
    %c10 = arith.constant 10 : index
    %10 = memref.load %arg1[%c10] : memref<22xf32, #tpu.memory_space<smem>>
    %c11 = arith.constant 11 : index
    %11 = memref.load %arg1[%c11] : memref<22xf32, #tpu.memory_space<smem>>
    %c12 = arith.constant 12 : index
    %12 = memref.load %arg1[%c12] : memref<22xf32, #tpu.memory_space<smem>>
    %c13 = arith.constant 13 : index
    %13 = memref.load %arg1[%c13] : memref<22xf32, #tpu.memory_space<smem>>
    %c14 = arith.constant 14 : index
    %14 = memref.load %arg1[%c14] : memref<22xf32, #tpu.memory_space<smem>>
    %c15 = arith.constant 15 : index
    %15 = memref.load %arg1[%c15] : memref<22xf32, #tpu.memory_space<smem>>
    %c16 = arith.constant 16 : index
    %16 = memref.load %arg1[%c16] : memref<22xf32, #tpu.memory_space<smem>>
    %c17 = arith.constant 17 : index
    %17 = memref.load %arg1[%c17] : memref<22xf32, #tpu.memory_space<smem>>
    %18 = arith.addf %9, %9 : f32
    %cst = arith.constant 5.000000e-01 : f32
    %19 = arith.mulf %18, %cst : f32
    %20 = arith.addf %10, %12 : f32
    %cst_0 = arith.constant 5.000000e-01 : f32
    %21 = arith.mulf %20, %cst_0 : f32
    %22 = arith.addf %11, %15 : f32
    %cst_1 = arith.constant 5.000000e-01 : f32
    %23 = arith.mulf %22, %cst_1 : f32
    %24 = arith.addf %12, %10 : f32
    %cst_2 = arith.constant 5.000000e-01 : f32
    %25 = arith.mulf %24, %cst_2 : f32
    %26 = arith.addf %13, %13 : f32
    %cst_3 = arith.constant 5.000000e-01 : f32
    %27 = arith.mulf %26, %cst_3 : f32
    %28 = arith.addf %14, %16 : f32
    %cst_4 = arith.constant 5.000000e-01 : f32
    %29 = arith.mulf %28, %cst_4 : f32
    %30 = arith.addf %15, %11 : f32
    %cst_5 = arith.constant 5.000000e-01 : f32
    %31 = arith.mulf %30, %cst_5 : f32
    %32 = arith.addf %16, %14 : f32
    %cst_6 = arith.constant 5.000000e-01 : f32
    %33 = arith.mulf %32, %cst_6 : f32
    %34 = arith.addf %17, %17 : f32
    %cst_7 = arith.constant 5.000000e-01 : f32
    %35 = arith.mulf %34, %cst_7 : f32
    %36 = arith.mulf %0, %19 : f32
    %37 = arith.addf %0, %36 : f32
    %38 = arith.mulf %1, %25 : f32
    %39 = arith.addf %37, %38 : f32
    %40 = arith.mulf %2, %31 : f32
    %41 = arith.addf %39, %40 : f32
    %42 = arith.mulf %0, %21 : f32
    %43 = arith.addf %1, %42 : f32
    %44 = arith.mulf %1, %27 : f32
    %45 = arith.addf %43, %44 : f32
    %46 = arith.mulf %2, %33 : f32
    %47 = arith.addf %45, %46 : f32
    %48 = arith.mulf %0, %23 : f32
    %49 = arith.addf %2, %48 : f32
    %50 = arith.mulf %1, %29 : f32
    %51 = arith.addf %49, %50 : f32
    %52 = arith.mulf %2, %35 : f32
    %53 = arith.addf %51, %52 : f32
    %54 = arith.mulf %3, %19 : f32
    %55 = arith.addf %3, %54 : f32
    %56 = arith.mulf %4, %25 : f32
    %57 = arith.addf %55, %56 : f32
    %58 = arith.mulf %5, %31 : f32
    %59 = arith.addf %57, %58 : f32
    %60 = arith.mulf %3, %21 : f32
    %61 = arith.addf %4, %60 : f32
    %62 = arith.mulf %4, %27 : f32
    %63 = arith.addf %61, %62 : f32
    %64 = arith.mulf %5, %33 : f32
    %65 = arith.addf %63, %64 : f32
    %66 = arith.mulf %3, %23 : f32
    %67 = arith.addf %5, %66 : f32
    %68 = arith.mulf %4, %29 : f32
    %69 = arith.addf %67, %68 : f32
    %70 = arith.mulf %5, %35 : f32
    %71 = arith.addf %69, %70 : f32
    %72 = arith.mulf %6, %19 : f32
    %73 = arith.addf %6, %72 : f32
    %74 = arith.mulf %7, %25 : f32
    %75 = arith.addf %73, %74 : f32
    %76 = arith.mulf %8, %31 : f32
    %77 = arith.addf %75, %76 : f32
    %78 = arith.mulf %6, %21 : f32
    %79 = arith.addf %7, %78 : f32
    %80 = arith.mulf %7, %27 : f32
    %81 = arith.addf %79, %80 : f32
    %82 = arith.mulf %8, %33 : f32
    %83 = arith.addf %81, %82 : f32
    %84 = arith.mulf %6, %23 : f32
    %85 = arith.addf %8, %84 : f32
    %86 = arith.mulf %7, %29 : f32
    %87 = arith.addf %85, %86 : f32
    %88 = arith.mulf %8, %35 : f32
    %89 = arith.addf %87, %88 : f32
    %c0_8 = arith.constant 0 : index
    %c0_9 = arith.constant 0 : index
    %90 = vector.load %arg2[%c0_8, %c0_9] : memref<3x16xf32, #tpu.memory_space<vmem>>, vector<3x16xf32>
    %91 = vector.extract_strided_slice %90 {offsets = [0, 0], sizes = [1, 16], strides = [1, 1]} : vector<3x16xf32> to vector<1x16xf32>
    %92 = vector.extract_strided_slice %90 {offsets = [1, 0], sizes = [1, 16], strides = [1, 1]} : vector<3x16xf32> to vector<1x16xf32>
    %93 = vector.extract_strided_slice %90 {offsets = [2, 0], sizes = [1, 16], strides = [1, 1]} : vector<3x16xf32> to vector<1x16xf32>
    %94 = vector.broadcast %19 : f32 to vector<1x16xf32>
    %95 = arith.mulf %94, %91 : vector<1x16xf32>
    %96 = arith.addf %91, %95 : vector<1x16xf32>
    %97 = vector.broadcast %25 : f32 to vector<1x16xf32>
    %98 = arith.mulf %97, %92 : vector<1x16xf32>
    %99 = arith.addf %96, %98 : vector<1x16xf32>
    %100 = vector.broadcast %31 : f32 to vector<1x16xf32>
    %101 = arith.mulf %100, %93 : vector<1x16xf32>
    %102 = arith.addf %99, %101 : vector<1x16xf32>
    %103 = vector.broadcast %21 : f32 to vector<1x16xf32>
    %104 = arith.mulf %103, %91 : vector<1x16xf32>
    %105 = arith.addf %92, %104 : vector<1x16xf32>
    %106 = vector.broadcast %27 : f32 to vector<1x16xf32>
    %107 = arith.mulf %106, %92 : vector<1x16xf32>
    %108 = arith.addf %105, %107 : vector<1x16xf32>
    %109 = vector.broadcast %33 : f32 to vector<1x16xf32>
    %110 = arith.mulf %109, %93 : vector<1x16xf32>
    %111 = arith.addf %108, %110 : vector<1x16xf32>
    %112 = vector.broadcast %23 : f32 to vector<1x16xf32>
    %113 = arith.mulf %112, %91 : vector<1x16xf32>
    %114 = arith.addf %93, %113 : vector<1x16xf32>
    %115 = vector.broadcast %29 : f32 to vector<1x16xf32>
    %116 = arith.mulf %115, %92 : vector<1x16xf32>
    %117 = arith.addf %114, %116 : vector<1x16xf32>
    %118 = vector.broadcast %35 : f32 to vector<1x16xf32>
    %119 = arith.mulf %118, %93 : vector<1x16xf32>
    %120 = arith.addf %117, %119 : vector<1x16xf32>
    %c0_10 = arith.constant 0 : index
    %c0_11 = arith.constant 0 : index
    %121 = vector.load %arg5[%c0_10, %c0_11] : memref<3x1024xf32, #tpu.memory_space<vmem>>, vector<3x1024xf32>
    %122 = vector.extract_strided_slice %121 {offsets = [0, 0], sizes = [1, 1024], strides = [1, 1]} : vector<3x1024xf32> to vector<1x1024xf32>
    %123 = vector.extract_strided_slice %121 {offsets = [1, 0], sizes = [1, 1024], strides = [1, 1]} : vector<3x1024xf32> to vector<1x1024xf32>
    %124 = vector.extract_strided_slice %121 {offsets = [2, 0], sizes = [1, 1024], strides = [1, 1]} : vector<3x1024xf32> to vector<1x1024xf32>
    %125 = vector.broadcast %41 : f32 to vector<1x1024xf32>
    %126 = arith.mulf %125, %122 : vector<1x1024xf32>
    %127 = vector.broadcast %59 : f32 to vector<1x1024xf32>
    %128 = arith.mulf %127, %123 : vector<1x1024xf32>
    %129 = arith.addf %126, %128 : vector<1x1024xf32>
    %130 = vector.broadcast %77 : f32 to vector<1x1024xf32>
    %131 = arith.mulf %130, %124 : vector<1x1024xf32>
    %132 = arith.addf %129, %131 : vector<1x1024xf32>
    %133 = vector.broadcast %47 : f32 to vector<1x1024xf32>
    %134 = arith.mulf %133, %122 : vector<1x1024xf32>
    %135 = vector.broadcast %65 : f32 to vector<1x1024xf32>
    %136 = arith.mulf %135, %123 : vector<1x1024xf32>
    %137 = arith.addf %134, %136 : vector<1x1024xf32>
    %138 = vector.broadcast %83 : f32 to vector<1x1024xf32>
    %139 = arith.mulf %138, %124 : vector<1x1024xf32>
    %140 = arith.addf %137, %139 : vector<1x1024xf32>
    %141 = vector.broadcast %53 : f32 to vector<1x1024xf32>
    %142 = arith.mulf %141, %122 : vector<1x1024xf32>
    %143 = vector.broadcast %71 : f32 to vector<1x1024xf32>
    %144 = arith.mulf %143, %123 : vector<1x1024xf32>
    %145 = arith.addf %142, %144 : vector<1x1024xf32>
    %146 = vector.broadcast %89 : f32 to vector<1x1024xf32>
    %147 = arith.mulf %146, %124 : vector<1x1024xf32>
    %148 = arith.addf %145, %147 : vector<1x1024xf32>
    %149 = tpu.concatenate %132, %140, %148 in 0 : vector<1x1024xf32>, vector<1x1024xf32>, vector<1x1024xf32> -> vector<3x1024xf32>
    %c0_12 = arith.constant 0 : index
    %c0_13 = arith.constant 0 : index
    %150 = vector.load %arg3[%c0_12, %c0_13] : memref<1x16xi32, #tpu.memory_space<vmem>>, vector<1x16xi32>
    %cst_14 = arith.constant 0.000000e+00 : f32
    %151 = vector.broadcast %cst_14 : f32 to vector<1x16xf32>
    %c18 = arith.constant 18 : index
    %152 = memref.load %arg1[%c18] : memref<22xf32, #tpu.memory_space<smem>>
    %c0_i32 = arith.constant 0 : i32
    %153 = vector.broadcast %c0_i32 : i32 to vector<1x16xi32>
    %154 = arith.cmpi eq, %150, %153 : vector<1x16xi32>
    %155 = arith.extui %154 : vector<1x16xi1> to vector<1x16xi32>
    %156 = arith.sitofp %155 : vector<1x16xi32> to vector<1x16xf32>
    %157 = vector.broadcast %152 : f32 to vector<1x16xf32>
    %158 = arith.mulf %157, %156 : vector<1x16xf32>
    %159 = arith.addf %151, %158 : vector<1x16xf32>
    %c19 = arith.constant 19 : index
    %160 = memref.load %arg1[%c19] : memref<22xf32, #tpu.memory_space<smem>>
    %c1_i32 = arith.constant 1 : i32
    %161 = vector.broadcast %c1_i32 : i32 to vector<1x16xi32>
    %162 = arith.cmpi eq, %150, %161 : vector<1x16xi32>
    %163 = arith.extui %162 : vector<1x16xi1> to vector<1x16xi32>
    %164 = arith.sitofp %163 : vector<1x16xi32> to vector<1x16xf32>
    %165 = vector.broadcast %160 : f32 to vector<1x16xf32>
    %166 = arith.mulf %165, %164 : vector<1x16xf32>
    %167 = arith.addf %159, %166 : vector<1x16xf32>
    %c20 = arith.constant 20 : index
    %168 = memref.load %arg1[%c20] : memref<22xf32, #tpu.memory_space<smem>>
    %c2_i32 = arith.constant 2 : i32
    %169 = vector.broadcast %c2_i32 : i32 to vector<1x16xi32>
    %170 = arith.cmpi eq, %150, %169 : vector<1x16xi32>
    %171 = arith.extui %170 : vector<1x16xi1> to vector<1x16xi32>
    %172 = arith.sitofp %171 : vector<1x16xi32> to vector<1x16xf32>
    %173 = vector.broadcast %168 : f32 to vector<1x16xf32>
    %174 = arith.mulf %173, %172 : vector<1x16xf32>
    %175 = arith.addf %167, %174 : vector<1x16xf32>
    %c21 = arith.constant 21 : index
    %176 = memref.load %arg1[%c21] : memref<22xf32, #tpu.memory_space<smem>>
    %c3_i32 = arith.constant 3 : i32
    %177 = vector.broadcast %c3_i32 : i32 to vector<1x16xi32>
    %178 = arith.cmpi eq, %150, %177 : vector<1x16xi32>
    %179 = arith.extui %178 : vector<1x16xi1> to vector<1x16xi32>
    %180 = arith.sitofp %179 : vector<1x16xi32> to vector<1x16xf32>
    %181 = vector.broadcast %176 : f32 to vector<1x16xf32>
    %182 = arith.mulf %181, %180 : vector<1x16xf32>
    %183 = arith.addf %175, %182 : vector<1x16xf32>
    %cst_15 = arith.constant 0.000000e+00 : f32
    %184 = vector.broadcast %cst_15 : f32 to vector<4x16xf32>
    %185 = tpu.concatenate %102, %111, %120, %183, %184 in 0 : vector<1x16xf32>, vector<1x16xf32>, vector<1x16xf32>, vector<1x16xf32>, vector<4x16xf32> -> vector<8x16xf32>
    %c0_16 = arith.constant 0 : index
    %c0_17 = arith.constant 0 : index
    %186 = vector.load %arg4[%c0_16, %c0_17] : memref<2x1024xi32, #tpu.memory_space<vmem>>, vector<2x1024xi32>
    %187 = vector.extract_strided_slice %186 {offsets = [0, 0], sizes = [1, 1024], strides = [1, 1]} : vector<2x1024xi32> to vector<1x1024xi32>
    %188 = vector.extract_strided_slice %186 {offsets = [1, 0], sizes = [1, 1024], strides = [1, 1]} : vector<2x1024xi32> to vector<1x1024xi32>
    %189 = tpu.concatenate %187, %188 in 1 : vector<1x1024xi32>, vector<1x1024xi32> -> vector<1x2048xi32>
    %190 = tpu.iota {dimensions = array<i32: 0>} : vector<16x2048xi32>
    %191 = vector.broadcast %189 : vector<1x2048xi32> to vector<16x2048xi32>
    %192 = arith.cmpi eq, %191, %190 : vector<16x2048xi32>
    %193 = arith.extui %192 : vector<16x2048xi1> to vector<16x2048xi32>
    %194 = arith.sitofp %193 : vector<16x2048xi32> to vector<16x2048xf32>
    %cst_18 = arith.constant dense<0.000000e+00> : vector<8x2048xf32>
    %195 = tpu.matmul %185, %194, %cst_18 {dimension_numbers = #tpu.dot_dimension_numbers<[1], [0], [0], [1], [0, 0, 1, 1], [], []>} : vector<8x16xf32>, vector<16x2048xf32>, vector<8x2048xf32> -> vector<8x2048xf32>
    %196 = vector.extract_strided_slice %195 {offsets = [0, 1024], sizes = [3, 1024], strides = [1, 1]} : vector<8x2048xf32> to vector<3x1024xf32>
    %197 = vector.extract_strided_slice %195 {offsets = [0, 0], sizes = [3, 1024], strides = [1, 1]} : vector<8x2048xf32> to vector<3x1024xf32>
    %198 = arith.subf %196, %197 : vector<3x1024xf32>
    %199 = arith.addf %198, %149 : vector<3x1024xf32>
    %200 = vector.extract_strided_slice %195 {offsets = [3, 0], sizes = [1, 1024], strides = [1, 1]} : vector<8x2048xf32> to vector<1x1024xf32>
    %201 = vector.extract_strided_slice %195 {offsets = [3, 1024], sizes = [1, 1024], strides = [1, 1]} : vector<8x2048xf32> to vector<1x1024xf32>
    %202 = arith.mulf %200, %201 : vector<1x1024xf32>
    %203 = arith.mulf %199, %199 : vector<3x1024xf32>
    %204 = vector.extract_strided_slice %203 {offsets = [0, 0], sizes = [1, 1024], strides = [1, 1]} : vector<3x1024xf32> to vector<1x1024xf32>
    %205 = vector.extract_strided_slice %203 {offsets = [1, 0], sizes = [1, 1024], strides = [1, 1]} : vector<3x1024xf32> to vector<1x1024xf32>
    %206 = arith.addf %204, %205 : vector<1x1024xf32>
    %207 = vector.extract_strided_slice %203 {offsets = [2, 0], sizes = [1, 1024], strides = [1, 1]} : vector<3x1024xf32> to vector<1x1024xf32>
    %208 = arith.addf %206, %207 : vector<1x1024xf32>
    %209 = vector.extract_strided_slice %208 {offsets = [0, 0], sizes = [1, 128], strides = [1, 1]} : vector<1x1024xf32> to vector<1x128xf32>
    %210 = vector.extract_strided_slice %208 {offsets = [0, 128], sizes = [1, 128], strides = [1, 1]} : vector<1x1024xf32> to vector<1x128xf32>
    %211 = vector.extract_strided_slice %208 {offsets = [0, 256], sizes = [1, 128], strides = [1, 1]} : vector<1x1024xf32> to vector<1x128xf32>
    %212 = vector.extract_strided_slice %208 {offsets = [0, 384], sizes = [1, 128], strides = [1, 1]} : vector<1x1024xf32> to vector<1x128xf32>
    %213 = vector.extract_strided_slice %208 {offsets = [0, 512], sizes = [1, 128], strides = [1, 1]} : vector<1x1024xf32> to vector<1x128xf32>
    %214 = vector.extract_strided_slice %208 {offsets = [0, 640], sizes = [1, 128], strides = [1, 1]} : vector<1x1024xf32> to vector<1x128xf32>
    %215 = vector.extract_strided_slice %208 {offsets = [0, 768], sizes = [1, 128], strides = [1, 1]} : vector<1x1024xf32> to vector<1x128xf32>
    %216 = vector.extract_strided_slice %208 {offsets = [0, 896], sizes = [1, 128], strides = [1, 1]} : vector<1x1024xf32> to vector<1x128xf32>
    %217 = tpu.concatenate %209, %210, %211, %212, %213, %214, %215, %216 in 0 : vector<1x128xf32>, vector<1x128xf32>, vector<1x128xf32>, vector<1x128xf32>, vector<1x128xf32>, vector<1x128xf32>, vector<1x128xf32>, vector<1x128xf32> -> vector<8x128xf32>
    %218 = vector.extract_strided_slice %202 {offsets = [0, 0], sizes = [1, 128], strides = [1, 1]} : vector<1x1024xf32> to vector<1x128xf32>
    %219 = vector.extract_strided_slice %202 {offsets = [0, 128], sizes = [1, 128], strides = [1, 1]} : vector<1x1024xf32> to vector<1x128xf32>
    %220 = vector.extract_strided_slice %202 {offsets = [0, 256], sizes = [1, 128], strides = [1, 1]} : vector<1x1024xf32> to vector<1x128xf32>
    %221 = vector.extract_strided_slice %202 {offsets = [0, 384], sizes = [1, 128], strides = [1, 1]} : vector<1x1024xf32> to vector<1x128xf32>
    %222 = vector.extract_strided_slice %202 {offsets = [0, 512], sizes = [1, 128], strides = [1, 1]} : vector<1x1024xf32> to vector<1x128xf32>
    %223 = vector.extract_strided_slice %202 {offsets = [0, 640], sizes = [1, 128], strides = [1, 1]} : vector<1x1024xf32> to vector<1x128xf32>
    %224 = vector.extract_strided_slice %202 {offsets = [0, 768], sizes = [1, 128], strides = [1, 1]} : vector<1x1024xf32> to vector<1x128xf32>
    %225 = vector.extract_strided_slice %202 {offsets = [0, 896], sizes = [1, 128], strides = [1, 1]} : vector<1x1024xf32> to vector<1x128xf32>
    %226 = tpu.concatenate %218, %219, %220, %221, %222, %223, %224, %225 in 0 : vector<1x128xf32>, vector<1x128xf32>, vector<1x128xf32>, vector<1x128xf32>, vector<1x128xf32>, vector<1x128xf32>, vector<1x128xf32>, vector<1x128xf32> -> vector<8x128xf32>
    %cst_19 = arith.constant 9.99999996E-13 : f32
    %227 = vector.broadcast %cst_19 : f32 to vector<8x128xf32>
    %228 = arith.addf %217, %227 : vector<8x128xf32>
    %229 = math.sqrt %228 : vector<8x128xf32>
    %cst_20 = arith.constant 6.250000e-02 : f32
    %230 = vector.broadcast %cst_20 : f32 to vector<8x128xf32>
    %231 = arith.mulf %217, %230 : vector<8x128xf32>
    %cst_21 = arith.constant 1.000000e+00 : f32
    %232 = vector.broadcast %cst_21 : f32 to vector<8x128xf32>
    %233 = arith.subf %232, %231 : vector<8x128xf32>
    %cst_22 = arith.constant 0.000000e+00 : f32
    %234 = vector.broadcast %cst_22 : f32 to vector<8x128xf32>
    %235 = arith.maximumf %233, %234 : vector<8x128xf32>
    %236 = arith.mulf %235, %235 : vector<8x128xf32>
    %237 = arith.mulf %226, %236 : vector<8x128xf32>
    %cst_23 = arith.constant 0.000000e+00 : f32
    %238 = vector.broadcast %cst_23 : f32 to vector<8x128xf32>
    %239 = arith.subf %238, %229 : vector<8x128xf32>
    %240 = math.exp %239 : vector<8x128xf32>
    %241 = arith.mulf %237, %240 : vector<8x128xf32>
    %cst_24 = arith.constant dense<0.000000e+00> : vector<8xf32>
    %242 = vector.multi_reduction <add>, %241, %cst_24 [1] : vector<8x128xf32> to vector<8xf32>
    %243 = vector.shape_cast %242 : vector<8xf32> to vector<8x1xf32>
    %244 = vector.shape_cast %243 : vector<8x1xf32> to vector<8x1xf32>
    %245 = vector.broadcast %244 : vector<8x1xf32> to vector<8x128xf32>
    %c0_25 = arith.constant 0 : index
    %c0_26 = arith.constant 0 : index
    %246 = vector.load %arg6[%c0_25, %c0_26] : memref<8x128xf32, #tpu.memory_space<vmem>>, vector<8x128xf32>
    tpu.vector_store %arg6[%c0_25, %c0_26], %245 {strides = array<i32>} : memref<8x128xf32, #tpu.memory_space<vmem>>, vector<8x128xf32>,
    return
  }
  func.func @transform_0(%arg0: i32) -> i32 {
    %c0_i32 = arith.constant 0 : i32
    %c0_i32_0 = arith.constant 0 : i32
    return %c0_i32 : i32
  }
  func.func @transform_1(%arg0: i32) -> (i32, i32) {
    %c0_i32 = arith.constant 0 : i32
    %c0_i32_0 = arith.constant 0 : i32
    %c0_i32_1 = arith.constant 0 : i32
    return %c0_i32, %c0_i32_0 : i32, i32
  }
  func.func @transform_2(%arg0: i32) -> (i32, i32) {
    %c0_i32 = arith.constant 0 : i32
    %c0_i32_0 = arith.constant 0 : i32
    %c0_i32_1 = arith.constant 0 : i32
    return %c0_i32, %c0_i32_0 : i32, i32
  }
  func.func @transform_3(%arg0: i32) -> (i32, i32) {
    %c0_i32 = arith.constant 0 : i32
    %c0_i32_0 = arith.constant 0 : i32
    return %c0_i32, %arg0 : i32, i32
  }
  func.func @transform_4(%arg0: i32) -> (i32, i32) {
    %c0_i32 = arith.constant 0 : i32
    %c0_i32_0 = arith.constant 0 : i32
    return %c0_i32, %arg0 : i32, i32
  }
  func.func @transform_5(%arg0: i32) -> (i32, i32) {
    %c0_i32 = arith.constant 0 : i32
    %c0_i32_0 = arith.constant 0 : i32
    return %arg0, %c0_i32 : i32, i32
  }
}

</mosaic_0001>

<llo_original>
// kernel: tpu_custom_call.1
$region0: #{tpu_custom_call.1}
  #allocation0 [shape = 'u32[]', space=smem, size = 0x4, offset = 0x4, fixed_abs, tag = 'smem constant byte address 0x4 - core index']
  #allocation1 [shape = 'u32[72,128]{1,0:T(1,128)}', space=vmem, size = 0x9000, scoped, tag = 'internal scratch']
  %s0 = inlined_call_operand.hbm [shape: f32[22], index: 0, kind: input, shape index: {}]
  %s1 = inlined_call_operand.hbm [shape: f32[3,16], index: 1, kind: input, shape index: {}]
  %s2 = inlined_call_operand.vmem [shape: s32[1,16], index: 2, kind: input, shape index: {}]
  %s3 = inlined_call_operand.hbm [shape: s32[2,1024], index: 3, kind: input, shape index: {}]
  %s4 = inlined_call_operand.hbm [shape: f32[3,1024], index: 4, kind: input, shape index: {}]
  %s5 = inlined_call_operand.hbm [shape: f32[8,128], index: 5, kind: output, shape index: {}]
  %s6 = sld [smem:[#allocation0]]
  $region46: #{tpu_custom_call.1} parent=0
    _
  %s8 = ssub.s32 1, %s6
  %s9 = scalar_select 0, %s8, %s6
  $region1: #{tpu_custom_call.1} parent=0
    #allocation2 [shape = 'u8[512]{0}', space=smem, size = 0x200, scoped, tag = 'input window, operand 0, single buffered']
    #allocation3 [shape = 's32[1]{0}', space=sflag, size = 0x4, scoped, tag = 'scoped memory for tpu_custom_call.1']
    #allocation4 [shape = 's32[1]{0}', space=sflag, size = 0x4, scoped, tag = 'scoped memory for tpu_custom_call.1']
    #allocation5 [shape = 's32[1]{0}', space=sflag, size = 0x4, scoped, tag = 'scoped memory for tpu_custom_call.1']
    #allocation6 [shape = 'u8[2048]{0}', space=vmem, size = 0x800, scoped, tag = 'input window, operand 1, single buffered']
    #allocation7 [shape = 'u8[8192]{0}', space=vmem, size = 0x2000, scoped, tag = 'input window, operand 3, single buffered']
    #allocation8 [shape = 's32[1]{0}', space=sflag, size = 0x4, scoped, tag = 'scoped memory for tpu_custom_call.1']
    #allocation9 [shape = 'u8[16384]{0}', space=vmem, size = 0x4000, scoped, tag = 'input window, operand 4, single buffered']
    #allocation10 [shape = 'u8[4096]{0}', space=vmem, size = 0x1000, scoped, tag = 'output window, operand 0, single buffered']
    %10 = vsyncpa [#allocation5], 0
    %11 = vsyncpa [#allocation3], 0
    %12 = vsyncpa [#allocation8], 0
    %13 = vsyncpa [#allocation4], 0
    // Predicated region
    $region2: #{tpu_custom_call.1} parent=1 // pred_check
      _
    $region3: #{tpu_custom_call.1} parent=1 // pred_check_branch
      %15 = sbr.rel (0) target = $region5
    $region4: #{tpu_custom_call.1} parent=1 // pred_region
      %17 = vsyncadd [#allocation5], 0
      %s19 = sshll.u32 %s0, 4
      %s20 = int_to_ptr.hbm [resolvable:$true] %s19
      %22 = dma.hbm_to_smem %s20, 16, [#allocation2], [#allocation5]
    $region5: #{tpu_custom_call.1} parent=1 // pred_fallthru
      _
    // Predicated region
    $region6: #{tpu_custom_call.1} parent=1 // pred_check
      _
    $region7: #{tpu_custom_call.1} parent=1 // pred_check_branch
      %24 = sbr.rel (0) target = $region9
    $region8: #{tpu_custom_call.1} parent=1 // pred_region
      %26 = vsyncadd [#allocation3], 0
      %s28 = sshll.u32 %s1, 4
      %s29 = int_to_ptr.hbm [resolvable:$true] %s28
      %s30 = sshll.u32 [#allocation6], 4
      %s31 = int_to_ptr.vmem [resolvable:$true] %s30
      %33 = dma.hbm_to_vmem [thread:$0]  %s29, 64, %s31, [#allocation3]
    $region9: #{tpu_custom_call.1} parent=1 // pred_fallthru
      _
    // Predicated region
    $region10: #{tpu_custom_call.1} parent=1 // pred_check
      _
    $region11: #{tpu_custom_call.1} parent=1 // pred_check_branch
      %35 = sbr.rel (0) target = $region13
    $region12: #{tpu_custom_call.1} parent=1 // pred_region
      _
    $region13: #{tpu_custom_call.1} parent=1 // pred_fallthru
      _
    // Predicated region
    $region14: #{tpu_custom_call.1} parent=1 // pred_check
      _
    $region15: #{tpu_custom_call.1} parent=1 // pred_check_branch
      %37 = sbr.rel (0) target = $region17
    $region16: #{tpu_custom_call.1} parent=1 // pred_region
      %39 = vsyncadd [#allocation8], 0
      %s41 = sshll.u32 %s3, 4
      %s42 = int_to_ptr.hbm [resolvable:$true] %s41
      %s43 = sshll.u32 [#allocation7], 4
      %s44 = int_to_ptr.vmem [resolvable:$true] %s43
      %46 = dma.hbm_to_vmem [thread:$0]  %s42, 256, %s44, [#allocation8]
    $region17: #{tpu_custom_call.1} parent=1 // pred_fallthru
      _
    // Predicated region
    $region18: #{tpu_custom_call.1} parent=1 // pred_check
      _
    $region19: #{tpu_custom_call.1} parent=1 // pred_check_branch
      %48 = sbr.rel (0) target = $region21
    $region20: #{tpu_custom_call.1} parent=1 // pred_region
      %50 = vsyncadd [#allocation8], 0
      %s52 = sshll.u32 %s4, 4
      %s53 = int_to_ptr.hbm [resolvable:$true] %s52
      %s54 = sshll.u32 [#allocation9], 4
      %s55 = int_to_ptr.vmem [resolvable:$true] %s54
      %57 = dma.hbm_to_vmem [thread:$0]  %s53, 512, %s55, [#allocation8]
    $region21: #{tpu_custom_call.1} parent=1 // pred_fallthru
      _
    // Predicated region
    $region22: #{tpu_custom_call.1} parent=1 // pred_check
      _
    $region23: #{tpu_custom_call.1} parent=1 // pred_check_branch
      %59 = sbr.rel (0) target = $region25
    $region24: #{tpu_custom_call.1} parent=1 // pred_region
      %61 = dma.done [#allocation5], 16
    $region25: #{tpu_custom_call.1} parent=1 // pred_fallthru
      _
    // Predicated region
    $region26: #{tpu_custom_call.1} parent=1 // pred_check
      _
    $region27: #{tpu_custom_call.1} parent=1 // pred_check_branch
      %63 = sbr.rel (0) target = $region29
    $region28: #{tpu_custom_call.1} parent=1 // pred_region
      %65 = dma.done [#allocation3], 64
    $region29: #{tpu_custom_call.1} parent=1 // pred_fallthru
      _
    // Predicated region
    $region30: #{tpu_custom_call.1} parent=1 // pred_check
      _
    $region31: #{tpu_custom_call.1} parent=1 // pred_check_branch
      %67 = sbr.rel (0) target = $region33
    $region32: #{tpu_custom_call.1} parent=1 // pred_region
      %69 = dma.done [#allocation8], 256
    $region33: #{tpu_custom_call.1} parent=1 // pred_fallthru
      _
    // Predicated region
    $region34: #{tpu_custom_call.1} parent=1 // pred_check
      _
    $region35: #{tpu_custom_call.1} parent=1 // pred_check_branch
      %71 = sbr.rel (0) target = $region37
    $region36: #{tpu_custom_call.1} parent=1 // pred_region
      %73 = dma.done [#allocation8], 512
    $region37: #{tpu_custom_call.1} parent=1 // pred_fallthru
      _
    %74 = sfence
    %s75 = sld [smem:[#allocation2]]
    %s76 = sld [smem:[#allocation2 + $0x1]]
    %s77 = sld [smem:[#allocation2 + $0x2]]
    %s78 = sld [smem:[#allocation2 + $0x3]]
    %s79 = sld [smem:[#allocation2 + $0x4]]
    %s80 = sld [smem:[#allocation2 + $0x5]]
    %s81 = sld [smem:[#allocation2 + $0x6]]
    %s82 = sld [smem:[#allocation2 + $0x7]]
    %s83 = sld [smem:[#allocation2 + $0x8]]
    %s84 = sld [smem:[#allocation2 + $0x9]]
    %s85 = sld [smem:[#allocation2 + $0xa]]
    %s86 = sld [smem:[#allocation2 + $0xb]]
    %s87 = sld [smem:[#allocation2 + $0xc]]
    %s88 = sld [smem:[#allocation2 + $0xd]]
    %s89 = sld [smem:[#allocation2 + $0xe]]
    %s90 = sld [smem:[#allocation2 + $0xf]]
    %s91 = sld [smem:[#allocation2 + $0x10]]
    %s92 = sld [smem:[#allocation2 + $0x11]]
    %s93 = sadd.f32 %s84, %s84
    %s94 = smul.f32 %s93, 0.5
    %s95 = sadd.f32 %s85, %s87
    %s96 = smul.f32 %s95, 0.5
    %s97 = sadd.f32 %s86, %s90
    %s98 = smul.f32 %s97, 0.5
    %s99 = sadd.f32 %s88, %s88
    %s100 = smul.f32 %s99, 0.5
    %s101 = sadd.f32 %s89, %s91
    %s102 = smul.f32 %s101, 0.5
    %s103 = sadd.f32 %s92, %s92
    %s104 = smul.f32 %s103, 0.5
    %s105 = smul.f32 %s75, %s94
    %s106 = sadd.f32 %s75, %s105
    %s107 = smul.f32 %s76, %s96
    %s108 = sadd.f32 %s106, %s107
    %s109 = smul.f32 %s77, %s98
    %s110 = sadd.f32 %s108, %s109
    %s111 = smul.f32 %s75, %s96
    %s112 = sadd.f32 %s76, %s111
    %s113 = smul.f32 %s76, %s100
    %s114 = sadd.f32 %s112, %s113
    %s115 = smul.f32 %s77, %s102
    %s116 = sadd.f32 %s114, %s115
    %s117 = smul.f32 %s75, %s98
    %s118 = sadd.f32 %s77, %s117
    %s119 = smul.f32 %s76, %s102
    %s120 = sadd.f32 %s118, %s119
    %s121 = smul.f32 %s77, %s104
    %s122 = sadd.f32 %s120, %s121
    %s123 = smul.f32 %s78, %s94
    %s124 = sadd.f32 %s78, %s123
    %s125 = smul.f32 %s79, %s96
    %s126 = sadd.f32 %s124, %s125
    %s127 = smul.f32 %s80, %s98
    %s128 = sadd.f32 %s126, %s127
    %s129 = smul.f32 %s78, %s96
    %s130 = sadd.f32 %s79, %s129
    %s131 = smul.f32 %s79, %s100
    %s132 = sadd.f32 %s130, %s131
    %s133 = smul.f32 %s80, %s102
    %s134 = sadd.f32 %s132, %s133
    %s135 = smul.f32 %s78, %s98
    %s136 = sadd.f32 %s80, %s135
    %s137 = smul.f32 %s79, %s102
    %s138 = sadd.f32 %s136, %s137
    %s139 = smul.f32 %s80, %s104
    %s140 = sadd.f32 %s138, %s139
    %s141 = smul.f32 %s81, %s94
    %s142 = sadd.f32 %s81, %s141
    %s143 = smul.f32 %s82, %s96
    %s144 = sadd.f32 %s142, %s143
    %s145 = smul.f32 %s83, %s98
    %s146 = sadd.f32 %s144, %s145
    %s147 = smul.f32 %s81, %s96
    %s148 = sadd.f32 %s82, %s147
    %s149 = smul.f32 %s82, %s100
    %s150 = sadd.f32 %s148, %s149
    %s151 = smul.f32 %s83, %s102
    %s152 = sadd.f32 %s150, %s151
    %s153 = smul.f32 %s81, %s98
    %s154 = sadd.f32 %s83, %s153
    %s155 = smul.f32 %s82, %s102
    %s156 = sadd.f32 %s154, %s155
    %s157 = smul.f32 %s83, %s104
    %s158 = sadd.f32 %s156, %s157
    %v159 = vld [vmem:[#allocation6] sm:$0x7]
    %v160 = vstv %s94
    %v161 = vmul.f32 %v160, %v159
    %v162 = vadd.f32 %v159, %v161
    %v163 = vstv %s96
    %v164 = vmul.f32 %v163, %v159
    %v166 = vrot.slane %v164, 1
    %v168 = vadd.f32 %v162, %v166
    %v169 = vstv %s98
    %v170 = vmul.f32 %v169, %v159
    %v172 = vrot.slane %v170, 2
    %v174 = vadd.f32 %v168, %v172
    %v175 = vrot.slane %v164, 7
    %v177 = vadd.f32 %v159, %v175
    %v178 = vstv %s100
    %v179 = vmul.f32 %v178, %v159
    %v180 = vadd.f32 %v177, %v179
    %v181 = vstv %s102
    %v182 = vmul.f32 %v181, %v159
    %v184 = vrot.slane %v182, 1
    %v186 = vadd.f32 %v180, %v184
    %v187 = vrot.slane %v170, 6
    %v189 = vadd.f32 %v159, %v187
    %v190 = vrot.slane %v182, 7
    %v192 = vadd.f32 %v189, %v190
    %v193 = vstv %s104
    %v194 = vmul.f32 %v193, %v159
    %v195 = vadd.f32 %v192, %v194
    %v196 = vld [vmem:[#allocation9] sm:$0x77]
    %v197 = vld [vmem:[#allocation9 + $0x8] sm:$0x77]
    %v198 = vld [vmem:[#allocation9 + $0x10] sm:$0x77]
    %v199 = vld [vmem:[#allocation9 + $0x18] sm:$0x77]
    %v200 = vstv %s110
    %v201 = vmul.f32 %v200, %v196
    %v202 = vmul.f32 %v200, %v197
    %v203 = vmul.f32 %v200, %v198
    %v204 = vmul.f32 %v200, %v199
    %v205 = vstv %s128
    %v206 = vmul.f32 %v205, %v196
    %v207 = vmul.f32 %v205, %v197
    %v208 = vmul.f32 %v205, %v198
    %v209 = vmul.f32 %v205, %v199
    %v214 = vrot.slane %v206, 5
    %v215 = vrot.slane %v214, 4
    %v216 = vrot.slane %v207, 5
    %v217 = vrot.slane %v216, 4
    %v218 = vrot.slane %v208, 5
    %v219 = vrot.slane %v218, 4
    %v220 = vrot.slane %v209, 5
    %v221 = vrot.slane %v220, 4
    %v226 = vadd.f32 %v201, %v215
    %v227 = vadd.f32 %v202, %v217
    %v228 = vadd.f32 %v203, %v219
    %v229 = vadd.f32 %v204, %v221
    %v230 = vstv %s146
    %v231 = vmul.f32 %v230, %v196
    %v232 = vmul.f32 %v230, %v197
    %v233 = vmul.f32 %v230, %v198
    %v234 = vmul.f32 %v230, %v199
    %v239 = vrot.slane %v231, 6
    %v240 = vrot.slane %v239, 4
    %v241 = vrot.slane %v232, 6
    %v242 = vrot.slane %v241, 4
    %v243 = vrot.slane %v233, 6
    %v244 = vrot.slane %v243, 4
    %v245 = vrot.slane %v234, 6
    %v246 = vrot.slane %v245, 4
    %v251 = vadd.f32 %v226, %v240
    %v252 = vadd.f32 %v227, %v242
    %v253 = vadd.f32 %v228, %v244
    %v254 = vadd.f32 %v229, %v246
    %v255 = vstv %s116
    %v256 = vmul.f32 %v255, %v196
    %v257 = vmul.f32 %v255, %v197
    %v258 = vmul.f32 %v255, %v198
    %v259 = vmul.f32 %v255, %v199
    %v260 = vstv %s134
    %v261 = vmul.f32 %v260, %v196
    %v262 = vmul.f32 %v260, %v197
    %v263 = vmul.f32 %v260, %v198
    %v264 = vmul.f32 %v260, %v199
    %v269 = vrot.slane %v261, 5
    %v270 = vrot.slane %v269, 4
    %v271 = vrot.slane %v262, 5
    %v272 = vrot.slane %v271, 4
    %v273 = vrot.slane %v263, 5
    %v274 = vrot.slane %v273, 4
    %v275 = vrot.slane %v264, 5
    %v276 = vrot.slane %v275, 4
    %v281 = vadd.f32 %v256, %v270
    %v282 = vadd.f32 %v257, %v272
    %v283 = vadd.f32 %v258, %v274
    %v284 = vadd.f32 %v259, %v276
    %v285 = vstv %s152
    %v286 = vmul.f32 %v285, %v196
    %v287 = vmul.f32 %v285, %v197
    %v288 = vmul.f32 %v285, %v198
    %v289 = vmul.f32 %v285, %v199
    %v294 = vrot.slane %v286, 6
    %v295 = vrot.slane %v294, 4
    %v296 = vrot.slane %v287, 6
    %v297 = vrot.slane %v296, 4
    %v298 = vrot.slane %v288, 6
    %v299 = vrot.slane %v298, 4
    %v300 = vrot.slane %v289, 6
    %v301 = vrot.slane %v300, 4
    %v306 = vadd.f32 %v281, %v295
    %v307 = vadd.f32 %v282, %v297
    %v308 = vadd.f32 %v283, %v299
    %v309 = vadd.f32 %v284, %v301
    %v310 = vstv %s122
    %v311 = vmul.f32 %v310, %v196
    %v312 = vmul.f32 %v310, %v197
    %v313 = vmul.f32 %v310, %v198
    %v314 = vmul.f32 %v310, %v199
    %v315 = vstv %s140
    %v316 = vmul.f32 %v315, %v196
    %v317 = vmul.f32 %v315, %v197
    %v318 = vmul.f32 %v315, %v198
    %v319 = vmul.f32 %v315, %v199
    %v324 = vrot.slane %v316, 5
    %v325 = vrot.slane %v324, 4
    %v326 = vrot.slane %v317, 5
    %v327 = vrot.slane %v326, 4
    %v328 = vrot.slane %v318, 5
    %v329 = vrot.slane %v328, 4
    %v330 = vrot.slane %v319, 5
    %v331 = vrot.slane %v330, 4
    %v336 = vadd.f32 %v311, %v325
    %v337 = vadd.f32 %v312, %v327
    %v338 = vadd.f32 %v313, %v329
    %v339 = vadd.f32 %v314, %v331
    %v340 = vstv %s158
    %v341 = vmul.f32 %v340, %v196
    %v342 = vmul.f32 %v340, %v197
    %v343 = vmul.f32 %v340, %v198
    %v344 = vmul.f32 %v340, %v199
    %v349 = vrot.slane %v341, 6
    %v350 = vrot.slane %v349, 4
    %v351 = vrot.slane %v342, 6
    %v352 = vrot.slane %v351, 4
    %v353 = vrot.slane %v343, 6
    %v354 = vrot.slane %v353, 4
    %v355 = vrot.slane %v344, 6
    %v356 = vrot.slane %v355, 4
    %v361 = vadd.f32 %v336, %v350
    %v362 = vadd.f32 %v337, %v352
    %v363 = vadd.f32 %v338, %v354
    %v364 = vadd.f32 %v339, %v356
    %v369 = vperm.slane %v251, 0
    %v370 = vperm.slane %v251, 4
    %v371 = vperm.slane %v252, 0
    %v372 = vperm.slane %v252, 4
    %v373 = vperm.slane %v253, 0
    %v374 = vperm.slane %v253, 4
    %v375 = vperm.slane %v254, 0
    %v376 = vperm.slane %v254, 4
    %v389 = vperm.slane %v306, 0
    %v390 = vperm.slane %v306, 4
    %v391 = vperm.slane %v307, 0
    %v392 = vperm.slane %v307, 4
    %v393 = vperm.slane %v308, 0
    %v394 = vperm.slane %v308, 4
    %v395 = vperm.slane %v309, 0
    %v396 = vperm.slane %v309, 4
    %v409 = vperm.slane %v361, 0
    %v410 = vperm.slane %v361, 4
    %v411 = vperm.slane %v362, 0
    %v412 = vperm.slane %v362, 4
    %v413 = vperm.slane %v363, 0
    %v414 = vperm.slane %v363, 4
    %v415 = vperm.slane %v364, 0
    %v416 = vperm.slane %v364, 4
    %vm425 = vcmask 1040384
    %v426 = vsel %vm425, %v369, %v389
    %v427 = vsel %vm425, %v370, %v390
    %v428 = vsel %vm425, %v371, %v391
    %v429 = vsel %vm425, %v372, %v392
    %v430 = vsel %vm425, %v373, %v393
    %v431 = vsel %vm425, %v374, %v394
    %v432 = vsel %vm425, %v375, %v395
    %v433 = vsel %vm425, %v376, %v396
    %vm434 = vcmask 1041408
    %v435 = vsel %vm434, %v426, %v409
    %v436 = vsel %vm434, %v427, %v410
    %v437 = vsel %vm434, %v428, %v411
    %v438 = vsel %vm434, %v429, %v412
    %v439 = vsel %vm434, %v430, %v413
    %v440 = vsel %vm434, %v431, %v414
    %v441 = vsel %vm434, %v432, %v415
    %v442 = vsel %vm434, %v433, %v416
    %v443 = vld [vmem:[%s2] sm:$0x1]
    %s444 = sld [smem:[#allocation2 + $0x12]]
    %vm445 = vcmp.eq.s32.totalorder %v443, 0
    %v446 = vsel %vm445, 1, 0
    %v447 = vcvt.s32.f32 %v446
    %v448 = vstv %s444
    %v449 = vmul.f32 %v448, %v447
    %v450 = vadd.f32 %v449, 0.0
    %s451 = sld [smem:[#allocation2 + $0x13]]
    %vm452 = vcmp.eq.s32.totalorder %v443, 1
    %v453 = vsel %vm452, 1, 0
    %v454 = vcvt.s32.f32 %v453
    %v455 = vstv %s451
    %v456 = vmul.f32 %v455, %v454
    %v457 = vadd.f32 %v450, %v456
    %s458 = sld [smem:[#allocation2 + $0x14]]
    %vm459 = vcmp.eq.s32.totalorder %v443, 2
    %v460 = vsel %vm459, 1, 0
    %v461 = vcvt.s32.f32 %v460
    %v462 = vstv %s458
    %v463 = vmul.f32 %v462, %v461
    %v464 = vadd.f32 %v457, %v463
    %s465 = sld [smem:[#allocation2 + $0x15]]
    %vm466 = vcmp.eq.s32.totalorder %v443, 3
    %v467 = vsel %vm466, 1, 0
    %v468 = vcvt.s32.f32 %v467
    %v469 = vstv %s465
    %v470 = vmul.f32 %v469, %v468
    %v471 = vadd.f32 %v464, %v470
    %v473 = vperm.slane %v471, 0
    %v475 = vsel %vm425, %v174, %v186
    %v476 = vsel %vm434, %v475, %v195
    %vm477 = vcmask 1042432
    %v478 = vsel %vm477, %v476, %v473
    %vm479 = vcmask 1043456
    %v480 = vsel %vm479, %v478, 0.0
    %v481 = vld [vmem:[#allocation7] sm:$0xff]
    %v482 = vld [vmem:[#allocation7 + $0x8] sm:$0xff]
    %v483 = vperm.slane %v481, 0
    %v484 = vperm.slane %v481, 2
    %v485 = vperm.slane %v481, 4
    %v486 = vperm.slane %v481, 6
    %v487 = vperm.slane %v482, 0
    %v488 = vperm.slane %v482, 2
    %v489 = vperm.slane %v482, 4
    %v490 = vperm.slane %v482, 6
    %v491 = vperm.slane %v481, 1
    %v492 = vperm.slane %v481, 3
    %v493 = vperm.slane %v481, 5
    %v494 = vperm.slane %v481, 7
    %v495 = vperm.slane %v482, 1
    %v496 = vperm.slane %v482, 3
    %v497 = vperm.slane %v482, 5
    %v498 = vperm.slane %v482, 7
    %v499 = vlaneseq
    %v500 = vshrl.u32 %v499, 7
    %v501 = vadd.s32 %v500, 8
    %v502 = vperm.slane %v483, 0
    %v503 = vperm.slane %v484, 0
    %v504 = vperm.slane %v485, 0
    %v505 = vperm.slane %v486, 0
    %v506 = vperm.slane %v487, 0
    %v507 = vperm.slane %v488, 0
    %v508 = vperm.slane %v489, 0
    %v509 = vperm.slane %v490, 0
    %v510 = vperm.slane %v491, 0
    %v511 = vperm.slane %v492, 0
    %v512 = vperm.slane %v493, 0
    %v513 = vperm.slane %v494, 0
    %v514 = vperm.slane %v495, 0
    %v515 = vperm.slane %v496, 0
    %v516 = vperm.slane %v497, 0
    %v517 = vperm.slane %v498, 0
    %vm518 = vcmp.eq.s32.totalorder %v502, %v500
    %vm519 = vcmp.eq.s32.totalorder %v503, %v500
    %vm520 = vcmp.eq.s32.totalorder %v504, %v500
    %vm521 = vcmp.eq.s32.totalorder %v505, %v500
    %vm522 = vcmp.eq.s32.totalorder %v506, %v500
    %vm523 = vcmp.eq.s32.totalorder %v507, %v500
    %vm524 = vcmp.eq.s32.totalorder %v508, %v500
    %vm525 = vcmp.eq.s32.totalorder %v509, %v500
    %vm526 = vcmp.eq.s32.totalorder %v510, %v500
    %vm527 = vcmp.eq.s32.totalorder %v511, %v500
    %vm528 = vcmp.eq.s32.totalorder %v512, %v500
    %vm529 = vcmp.eq.s32.totalorder %v513, %v500
    %vm530 = vcmp.eq.s32.totalorder %v514, %v500
    %vm531 = vcmp.eq.s32.totalorder %v515, %v500
    %vm532 = vcmp.eq.s32.totalorder %v516, %v500
    %vm533 = vcmp.eq.s32.totalorder %v517, %v500
    %vm534 = vcmp.eq.s32.totalorder %v502, %v501
    %vm535 = vcmp.eq.s32.totalorder %v503, %v501
    %vm536 = vcmp.eq.s32.totalorder %v504, %v501
    %vm537 = vcmp.eq.s32.totalorder %v505, %v501
    %vm538 = vcmp.eq.s32.totalorder %v506, %v501
    %vm539 = vcmp.eq.s32.totalorder %v507, %v501
    %vm540 = vcmp.eq.s32.totalorder %v508, %v501
    %vm541 = vcmp.eq.s32.totalorder %v509, %v501
    %vm542 = vcmp.eq.s32.totalorder %v510, %v501
    %vm543 = vcmp.eq.s32.totalorder %v511, %v501
    %vm544 = vcmp.eq.s32.totalorder %v512, %v501
    %vm545 = vcmp.eq.s32.totalorder %v513, %v501
    %vm546 = vcmp.eq.s32.totalorder %v514, %v501
    %vm547 = vcmp.eq.s32.totalorder %v515, %v501
    %vm548 = vcmp.eq.s32.totalorder %v516, %v501
    %vm549 = vcmp.eq.s32.totalorder %v517, %v501
    %v550 = vsel %vm518, 1, 0
    %v551 = vsel %vm519, 1, 0
    %v552 = vsel %vm520, 1, 0
    %v553 = vsel %vm521, 1, 0
    %v554 = vsel %vm522, 1, 0
    %v555 = vsel %vm523, 1, 0
    %v556 = vsel %vm524, 1, 0
    %v557 = vsel %vm525, 1, 0
    %v558 = vsel %vm526, 1, 0
    %v559 = vsel %vm527, 1, 0
    %v560 = vsel %vm528, 1, 0
    %v561 = vsel %vm529, 1, 0
    %v562 = vsel %vm530, 1, 0
    %v563 = vsel %vm531, 1, 0
    %v564 = vsel %vm532, 1, 0
    %v565 = vsel %vm533, 1, 0
    %v566 = vsel %vm534, 1, 0
    %v567 = vsel %vm535, 1, 0
    %v568 = vsel %vm536, 1, 0
    %v569 = vsel %vm537, 1, 0
    %v570 = vsel %vm538, 1, 0
    %v571 = vsel %vm539, 1, 0
    %v572 = vsel %vm540, 1, 0
    %v573 = vsel %vm541, 1, 0
    %v574 = vsel %vm542, 1, 0
    %v575 = vsel %vm543, 1, 0
    %v576 = vsel %vm544, 1, 0
    %v577 = vsel %vm545, 1, 0
    %v578 = vsel %vm546, 1, 0
    %v579 = vsel %vm547, 1, 0
    %v580 = vsel %vm548, 1, 0
    %v581 = vsel %vm549, 1, 0
    %v582 = vcvt.s32.f32 %v550
    %v583 = vcvt.s32.f32 %v551
    %v584 = vcvt.s32.f32 %v552
    %v585 = vcvt.s32.f32 %v553
    %v586 = vcvt.s32.f32 %v554
    %v587 = vcvt.s32.f32 %v555
    %v588 = vcvt.s32.f32 %v556
    %v589 = vcvt.s32.f32 %v557
    %v590 = vcvt.s32.f32 %v558
    %v591 = vcvt.s32.f32 %v559
    %v592 = vcvt.s32.f32 %v560
    %v593 = vcvt.s32.f32 %v561
    %v594 = vcvt.s32.f32 %v562
    %v595 = vcvt.s32.f32 %v563
    %v596 = vcvt.s32.f32 %v564
    %v597 = vcvt.s32.f32 %v565
    %v598 = vcvt.s32.f32 %v566
    %v599 = vcvt.s32.f32 %v567
    %v600 = vcvt.s32.f32 %v568
    %v601 = vcvt.s32.f32 %v569
    %v602 = vcvt.s32.f32 %v570
    %v603 = vcvt.s32.f32 %v571
    %v604 = vcvt.s32.f32 %v572
    %v605 = vcvt.s32.f32 %v573
    %v606 = vcvt.s32.f32 %v574
    %v607 = vcvt.s32.f32 %v575
    %v608 = vcvt.s32.f32 %v576
    %v609 = vcvt.s32.f32 %v577
    %v610 = vcvt.s32.f32 %v578
    %v611 = vcvt.s32.f32 %v579
    %v612 = vcvt.s32.f32 %v580
    %v613 = vcvt.s32.f32 %v581
    %vm614 = vcmask 130048
    %v616 = vsel %vm614, %v480, 0
    %618 = vmatpush.msra.mxu0 0.0
    %619 = vmatpush.msra.mxu0 0.0
    %620 = vmatpush.msra.mxu0 0.0
    %621 = vmatpush.msra.mxu0 0.0
    %622 = vmatpush.msra.mxu0 0.0
    %623 = vmatpush.msra.mxu0 0.0
    %624 = vmatpush.msra.mxu0 0.0
    %625 = vmatpush.msra.mxu0 0.0
    %626 = vmatpush.msra.mxu0 0.0
    %627 = vmatpush.msra.mxu0 0.0
    %628 = vmatpush.msra.mxu0 0.0
    %629 = vmatpush.msra.mxu0 0.0
    %630 = vmatpush.msra.mxu0 0.0
    %631 = vmatpush.msra.mxu0 0.0
    %632 = vmatpush.msra.mxu0 %v598
    %633 = vmatpush.msra.mxu0 %v582
    %634 = vmatmul.f32.gmra.mxu0 %v616
    %v635 = vpop.f32.mrf.mxu0
    %v636 = vadd.f32 0.0, %v635
    %637 = vdwg.mxu0
    %638 = vmatpush.msra.mxu0 0.0
    %639 = vmatpush.msra.mxu0 0.0
    %640 = vmatpush.msra.mxu0 0.0
    %641 = vmatpush.msra.mxu0 0.0
    %642 = vmatpush.msra.mxu0 0.0
    %643 = vmatpush.msra.mxu0 0.0
    %644 = vmatpush.msra.mxu0 0.0
    %645 = vmatpush.msra.mxu0 0.0
    %646 = vmatpush.msra.mxu0 0.0
    %647 = vmatpush.msra.mxu0 0.0
    %648 = vmatpush.msra.mxu0 0.0
    %649 = vmatpush.msra.mxu0 0.0
    %650 = vmatpush.msra.mxu0 0.0
    %651 = vmatpush.msra.mxu0 0.0
    %652 = vmatpush.msra.mxu0 %v599
    %653 = vmatpush.msra.mxu0 %v583
    %654 = vmatmul.f32.gmra.mxu0 %v616
    %v655 = vpop.f32.mrf.mxu0
    %v656 = vadd.f32 0.0, %v655
    %657 = vdwg.mxu0
    %658 = vmatpush.msra.mxu0 0.0
    %659 = vmatpush.msra.mxu0 0.0
    %660 = vmatpush.msra.mxu0 0.0
    %661 = vmatpush.msra.mxu0 0.0
    %662 = vmatpush.msra.mxu0 0.0
    %663 = vmatpush.msra.mxu0 0.0
    %664 = vmatpush.msra.mxu0 0.0
    %665 = vmatpush.msra.mxu0 0.0
    %666 = vmatpush.msra.mxu0 0.0
    %667 = vmatpush.msra.mxu0 0.0
    %668 = vmatpush.msra.mxu0 0.0
    %669 = vmatpush.msra.mxu0 0.0
    %670 = vmatpush.msra.mxu0 0.0
    %671 = vmatpush.msra.mxu0 0.0
    %672 = vmatpush.msra.mxu0 %v600
    %673 = vmatpush.msra.mxu0 %v584
    %674 = vmatmul.f32.gmra.mxu0 %v616
    %v675 = vpop.f32.mrf.mxu0
    %v676 = vadd.f32 0.0, %v675
    %677 = vdwg.mxu0
    %678 = vmatpush.msra.mxu0 0.0
    %679 = vmatpush.msra.mxu0 0.0
    %680 = vmatpush.msra.mxu0 0.0
    %681 = vmatpush.msra.mxu0 0.0
    %682 = vmatpush.msra.mxu0 0.0
    %683 = vmatpush.msra.mxu0 0.0
    %684 = vmatpush.msra.mxu0 0.0
    %685 = vmatpush.msra.mxu0 0.0
    %686 = vmatpush.msra.mxu0 0.0
    %687 = vmatpush.msra.mxu0 0.0
    %688 = vmatpush.msra.mxu0 0.0
    %689 = vmatpush.msra.mxu0 0.0
    %690 = vmatpush.msra.mxu0 0.0
    %691 = vmatpush.msra.mxu0 0.0
    %692 = vmatpush.msra.mxu0 %v601
    %693 = vmatpush.msra.mxu0 %v585
    %694 = vmatmul.f32.gmra.mxu0 %v616
    %v695 = vpop.f32.mrf.mxu0
    %v696 = vadd.f32 0.0, %v695
    %697 = vdwg.mxu0
    %698 = vmatpush.msra.mxu0 0.0
    %699 = vmatpush.msra.mxu0 0.0
    %700 = vmatpush.msra.mxu0 0.0
    %701 = vmatpush.msra.mxu0 0.0
    %702 = vmatpush.msra.mxu0 0.0
    %703 = vmatpush.msra.mxu0 0.0
    %704 = vmatpush.msra.mxu0 0.0
    %705 = vmatpush.msra.mxu0 0.0
    %706 = vmatpush.msra.mxu0 0.0
    %707 = vmatpush.msra.mxu0 0.0
    %708 = vmatpush.msra.mxu0 0.0
    %709 = vmatpush.msra.mxu0 0.0
    %710 = vmatpush.msra.mxu0 0.0
    %711 = vmatpush.msra.mxu0 0.0
    %712 = vmatpush.msra.mxu0 %v602
    %713 = vmatpush.msra.mxu0 %v586
    %714 = vmatmul.f32.gmra.mxu0 %v616
    %v715 = vpop.f32.mrf.mxu0
    %v716 = vadd.f32 0.0, %v715
    %717 = vdwg.mxu0
    %718 = vmatpush.msra.mxu0 0.0
    %719 = vmatpush.msra.mxu0 0.0
    %720 = vmatpush.msra.mxu0 0.0
    %721 = vmatpush.msra.mxu0 0.0
    %722 = vmatpush.msra.mxu0 0.0
    %723 = vmatpush.msra.mxu0 0.0
    %724 = vmatpush.msra.mxu0 0.0
    %725 = vmatpush.msra.mxu0 0.0
    %726 = vmatpush.msra.mxu0 0.0
    %727 = vmatpush.msra.mxu0 0.0
    %728 = vmatpush.msra.mxu0 0.0
    %729 = vmatpush.msra.mxu0 0.0
    %730 = vmatpush.msra.mxu0 0.0
    %731 = vmatpush.msra.mxu0 0.0
    %732 = vmatpush.msra.mxu0 %v603
    %733 = vmatpush.msra.mxu0 %v587
    %734 = vmatmul.f32.gmra.mxu0 %v616
    %v735 = vpop.f32.mrf.mxu0
    %v736 = vadd.f32 0.0, %v735
    %737 = vdwg.mxu0
    %738 = vmatpush.msra.mxu0 0.0
    %739 = vmatpush.msra.mxu0 0.0
    %740 = vmatpush.msra.mxu0 0.0
    %741 = vmatpush.msra.mxu0 0.0
    %742 = vmatpush.msra.mxu0 0.0
    %743 = vmatpush.msra.mxu0 0.0
    %744 = vmatpush.msra.mxu0 0.0
    %745 = vmatpush.msra.mxu0 0.0
    %746 = vmatpush.msra.mxu0 0.0
    %747 = vmatpush.msra.mxu0 0.0
    %748 = vmatpush.msra.mxu0 0.0
    %749 = vmatpush.msra.mxu0 0.0
    %750 = vmatpush.msra.mxu0 0.0
    %751 = vmatpush.msra.mxu0 0.0
    %752 = vmatpush.msra.mxu0 %v604
    %753 = vmatpush.msra.mxu0 %v588
    %754 = vmatmul.f32.gmra.mxu0 %v616
    %v755 = vpop.f32.mrf.mxu0
    %v756 = vadd.f32 0.0, %v755
    %757 = vdwg.mxu0
    %758 = vmatpush.msra.mxu0 0.0
    %759 = vmatpush.msra.mxu0 0.0
    %760 = vmatpush.msra.mxu0 0.0
    %761 = vmatpush.msra.mxu0 0.0
    %762 = vmatpush.msra.mxu0 0.0
    %763 = vmatpush.msra.mxu0 0.0
    %764 = vmatpush.msra.mxu0 0.0
    %765 = vmatpush.msra.mxu0 0.0
    %766 = vmatpush.msra.mxu0 0.0
    %767 = vmatpush.msra.mxu0 0.0
    %768 = vmatpush.msra.mxu0 0.0
    %769 = vmatpush.msra.mxu0 0.0
    %770 = vmatpush.msra.mxu0 0.0
    %771 = vmatpush.msra.mxu0 0.0
    %772 = vmatpush.msra.mxu0 %v605
    %773 = vmatpush.msra.mxu0 %v589
    %774 = vmatmul.f32.gmra.mxu0 %v616
    %v775 = vpop.f32.mrf.mxu0
    %v776 = vadd.f32 0.0, %v775
    %777 = vdwg.mxu0
    %778 = vmatpush.msra.mxu0 0.0
    %779 = vmatpush.msra.mxu0 0.0
    %780 = vmatpush.msra.mxu0 0.0
    %781 = vmatpush.msra.mxu0 0.0
    %782 = vmatpush.msra.mxu0 0.0
    %783 = vmatpush.msra.mxu0 0.0
    %784 = vmatpush.msra.mxu0 0.0
    %785 = vmatpush.msra.mxu0 0.0
    %786 = vmatpush.msra.mxu0 0.0
    %787 = vmatpush.msra.mxu0 0.0
    %788 = vmatpush.msra.mxu0 0.0
    %789 = vmatpush.msra.mxu0 0.0
    %790 = vmatpush.msra.mxu0 0.0
    %791 = vmatpush.msra.mxu0 0.0
    %792 = vmatpush.msra.mxu0 %v606
    %793 = vmatpush.msra.mxu0 %v590
    %794 = vmatmul.f32.gmra.mxu0 %v616
    %v795 = vpop.f32.mrf.mxu0
    %v796 = vadd.f32 0.0, %v795
    %797 = vdwg.mxu0
    %798 = vmatpush.msra.mxu0 0.0
    %799 = vmatpush.msra.mxu0 0.0
    %800 = vmatpush.msra.mxu0 0.0
    %801 = vmatpush.msra.mxu0 0.0
    %802 = vmatpush.msra.mxu0 0.0
    %803 = vmatpush.msra.mxu0 0.0
    %804 = vmatpush.msra.mxu0 0.0
    %805 = vmatpush.msra.mxu0 0.0
    %806 = vmatpush.msra.mxu0 0.0
    %807 = vmatpush.msra.mxu0 0.0
    %808 = vmatpush.msra.mxu0 0.0
    %809 = vmatpush.msra.mxu0 0.0
    %810 = vmatpush.msra.mxu0 0.0
    %811 = vmatpush.msra.mxu0 0.0
    %812 = vmatpush.msra.mxu0 %v607
    %813 = vmatpush.msra.mxu0 %v591
    %814 = vmatmul.f32.gmra.mxu0 %v616
    %v815 = vpop.f32.mrf.mxu0
    %v816 = vadd.f32 0.0, %v815
    %817 = vdwg.mxu0
    %818 = vmatpush.msra.mxu0 0.0
    %819 = vmatpush.msra.mxu0 0.0
    %820 = vmatpush.msra.mxu0 0.0
    %821 = vmatpush.msra.mxu0 0.0
    %822 = vmatpush.msra.mxu0 0.0
    %823 = vmatpush.msra.mxu0 0.0
    %824 = vmatpush.msra.mxu0 0.0
    %825 = vmatpush.msra.mxu0 0.0
    %826 = vmatpush.msra.mxu0 0.0
    %827 = vmatpush.msra.mxu0 0.0
    %828 = vmatpush.msra.mxu0 0.0
    %829 = vmatpush.msra.mxu0 0.0
    %830 = vmatpush.msra.mxu0 0.0
    %831 = vmatpush.msra.mxu0 0.0
    %832 = vmatpush.msra.mxu0 %v608
    %833 = vmatpush.msra.mxu0 %v592
    %834 = vmatmul.f32.gmra.mxu0 %v616
    %v835 = vpop.f32.mrf.mxu0
    %v836 = vadd.f32 0.0, %v835
    %837 = vdwg.mxu0
    %838 = vmatpush.msra.mxu0 0.0
    %839 = vmatpush.msra.mxu0 0.0
    %840 = vmatpush.msra.mxu0 0.0
    %841 = vmatpush.msra.mxu0 0.0
    %842 = vmatpush.msra.mxu0 0.0
    %843 = vmatpush.msra.mxu0 0.0
    %844 = vmatpush.msra.mxu0 0.0
    %845 = vmatpush.msra.mxu0 0.0
    %846 = vmatpush.msra.mxu0 0.0
    %847 = vmatpush.msra.mxu0 0.0
    %848 = vmatpush.msra.mxu0 0.0
    %849 = vmatpush.msra.mxu0 0.0
    %850 = vmatpush.msra.mxu0 0.0
    %851 = vmatpush.msra.mxu0 0.0
    %852 = vmatpush.msra.mxu0 %v609
    %853 = vmatpush.msra.mxu0 %v593
    %854 = vmatmul.f32.gmra.mxu0 %v616
    %v855 = vpop.f32.mrf.mxu0
    %v856 = vadd.f32 0.0, %v855
    %857 = vdwg.mxu0
    %858 = vmatpush.msra.mxu0 0.0
    %859 = vmatpush.msra.mxu0 0.0
    %860 = vmatpush.msra.mxu0 0.0
    %861 = vmatpush.msra.mxu0 0.0
    %862 = vmatpush.msra.mxu0 0.0
    %863 = vmatpush.msra.mxu0 0.0
    %864 = vmatpush.msra.mxu0 0.0
    %865 = vmatpush.msra.mxu0 0.0
    %866 = vmatpush.msra.mxu0 0.0
    %867 = vmatpush.msra.mxu0 0.0
    %868 = vmatpush.msra.mxu0 0.0
    %869 = vmatpush.msra.mxu0 0.0
    %870 = vmatpush.msra.mxu0 0.0
    %871 = vmatpush.msra.mxu0 0.0
    %872 = vmatpush.msra.mxu0 %v610
    %873 = vmatpush.msra.mxu0 %v594
    %874 = vmatmul.f32.gmra.mxu0 %v616
    %v875 = vpop.f32.mrf.mxu0
    %v876 = vadd.f32 0.0, %v875
    %877 = vdwg.mxu0
    %878 = vmatpush.msra.mxu0 0.0
    %879 = vmatpush.msra.mxu0 0.0
    %880 = vmatpush.msra.mxu0 0.0
    %881 = vmatpush.msra.mxu0 0.0
    %882 = vmatpush.msra.mxu0 0.0
    %883 = vmatpush.msra.mxu0 0.0
    %884 = vmatpush.msra.mxu0 0.0
    %885 = vmatpush.msra.mxu0 0.0
    %886 = vmatpush.msra.mxu0 0.0
    %887 = vmatpush.msra.mxu0 0.0
    %888 = vmatpush.msra.mxu0 0.0
    %889 = vmatpush.msra.mxu0 0.0
    %890 = vmatpush.msra.mxu0 0.0
    %891 = vmatpush.msra.mxu0 0.0
    %892 = vmatpush.msra.mxu0 %v611
    %893 = vmatpush.msra.mxu0 %v595
    %894 = vmatmul.f32.gmra.mxu0 %v616
    %v895 = vpop.f32.mrf.mxu0
    %v896 = vadd.f32 0.0, %v895
    %897 = vdwg.mxu0
    %898 = vmatpush.msra.mxu0 0.0
    %899 = vmatpush.msra.mxu0 0.0
    %900 = vmatpush.msra.mxu0 0.0
    %901 = vmatpush.msra.mxu0 0.0
    %902 = vmatpush.msra.mxu0 0.0
    %903 = vmatpush.msra.mxu0 0.0
    %904 = vmatpush.msra.mxu0 0.0
    %905 = vmatpush.msra.mxu0 0.0
    %906 = vmatpush.msra.mxu0 0.0
    %907 = vmatpush.msra.mxu0 0.0
    %908 = vmatpush.msra.mxu0 0.0
    %909 = vmatpush.msra.mxu0 0.0
    %910 = vmatpush.msra.mxu0 0.0
    %911 = vmatpush.msra.mxu0 0.0
    %912 = vmatpush.msra.mxu0 %v612
    %913 = vmatpush.msra.mxu0 %v596
    %914 = vmatmul.f32.gmra.mxu0 %v616
    %v915 = vpop.f32.mrf.mxu0
    %v916 = vadd.f32 0.0, %v915
    %917 = vdwg.mxu0
    %918 = vmatpush.msra.mxu0 0.0
    %919 = vmatpush.msra.mxu0 0.0
    %920 = vmatpush.msra.mxu0 0.0
    %921 = vmatpush.msra.mxu0 0.0
    %922 = vmatpush.msra.mxu0 0.0
    %923 = vmatpush.msra.mxu0 0.0
    %924 = vmatpush.msra.mxu0 0.0
    %925 = vmatpush.msra.mxu0 0.0
    %926 = vmatpush.msra.mxu0 0.0
    %927 = vmatpush.msra.mxu0 0.0
    %928 = vmatpush.msra.mxu0 0.0
    %929 = vmatpush.msra.mxu0 0.0
    %930 = vmatpush.msra.mxu0 0.0
    %931 = vmatpush.msra.mxu0 0.0
    %932 = vmatpush.msra.mxu0 %v613
    %933 = vmatpush.msra.mxu0 %v597
    %934 = vmatmul.f32.gmra.mxu0 %v616
    %v935 = vpop.f32.mrf.mxu0
    %v936 = vadd.f32 0.0, %v935
    %937 = vdwg.mxu0
    %v938 = vsub.f32 %v796, %v636
    %v939 = vsub.f32 %v816, %v656
    %v940 = vsub.f32 %v836, %v676
    %v941 = vsub.f32 %v856, %v696
    %v942 = vsub.f32 %v876, %v716
    %v943 = vsub.f32 %v896, %v736
    %v944 = vsub.f32 %v916, %v756
    %v945 = vsub.f32 %v936, %v776
    %v946 = vadd.f32 %v938, %v435
    %v947 = vadd.f32 %v939, %v436
    %v948 = vadd.f32 %v940, %v437
    %v949 = vadd.f32 %v941, %v438
    %v950 = vadd.f32 %v942, %v439
    %v951 = vadd.f32 %v943, %v440
    %v952 = vadd.f32 %v944, %v441
    %v953 = vadd.f32 %v945, %v442
    %v954 = vmul.f32 %v636, %v796
    %v955 = vmul.f32 %v656, %v816
    %v956 = vmul.f32 %v676, %v836
    %v957 = vmul.f32 %v696, %v856
    %v958 = vmul.f32 %v716, %v876
    %v959 = vmul.f32 %v736, %v896
    %v960 = vmul.f32 %v756, %v916
    %v961 = vmul.f32 %v776, %v936
    %v962 = vmul.f32 %v946, %v946
    %v963 = vmul.f32 %v947, %v947
    %v964 = vmul.f32 %v948, %v948
    %v965 = vmul.f32 %v949, %v949
    %v966 = vmul.f32 %v950, %v950
    %v967 = vmul.f32 %v951, %v951
    %v968 = vmul.f32 %v952, %v952
    %v969 = vmul.f32 %v953, %v953
    %v978 = vrot.slane %v962, 1
    %v979 = vrot.slane %v963, 1
    %v980 = vrot.slane %v964, 1
    %v981 = vrot.slane %v965, 1
    %v982 = vrot.slane %v966, 1
    %v983 = vrot.slane %v967, 1
    %v984 = vrot.slane %v968, 1
    %v985 = vrot.slane %v969, 1
    %v994 = vadd.f32 %v962, %v978
    %v995 = vadd.f32 %v963, %v979
    %v996 = vadd.f32 %v964, %v980
    %v997 = vadd.f32 %v965, %v981
    %v998 = vadd.f32 %v966, %v982
    %v999 = vadd.f32 %v967, %v983
    %v1000 = vadd.f32 %v968, %v984
    %v1001 = vadd.f32 %v969, %v985
    %v1002 = vrot.slane %v962, 2
    %v1003 = vrot.slane %v963, 2
    %v1004 = vrot.slane %v964, 2
    %v1005 = vrot.slane %v965, 2
    %v1006 = vrot.slane %v966, 2
    %v1007 = vrot.slane %v967, 2
    %v1008 = vrot.slane %v968, 2
    %v1009 = vrot.slane %v969, 2
    %v1018 = vadd.f32 %v994, %v1002
    %v1019 = vadd.f32 %v995, %v1003
    %v1020 = vadd.f32 %v996, %v1004
    %v1021 = vadd.f32 %v997, %v1005
    %v1022 = vadd.f32 %v998, %v1006
    %v1023 = vadd.f32 %v999, %v1007
    %v1024 = vadd.f32 %v1000, %v1008
    %v1025 = vadd.f32 %v1001, %v1009
    %v1027 = vrot.slane %v1019, 7
    %v1030 = vrot.slane %v1020, 6
    %v1033 = vrot.slane %v1021, 5
    %v1036 = vrot.slane %v1022, 4
    %v1039 = vrot.slane %v1023, 3
    %v1042 = vrot.slane %v1024, 2
    %v1045 = vrot.slane %v1025, 1
    %v1047 = vsel %vm425, %v1018, %v1027
    %v1048 = vsel %vm434, %v1047, %v1030
    %v1049 = vsel %vm477, %v1048, %v1033
    %v1050 = vsel %vm479, %v1049, %v1036
    %vm1051 = vcmask 1044480
    %v1052 = vsel %vm1051, %v1050, %v1039
    %vm1053 = vcmask 1045504
    %v1054 = vsel %vm1053, %v1052, %v1042
    %vm1055 = vcmask 1046528
    %v1056 = vsel %vm1055, %v1054, %v1045
    %v1058 = vrot.slane %v954, 3
    %v1061 = vrot.slane %v955, 2
    %v1064 = vrot.slane %v956, 1
    %v1067 = vrot.slane %v958, 7
    %v1070 = vrot.slane %v959, 6
    %v1073 = vrot.slane %v960, 5
    %v1076 = vrot.slane %v961, 4
    %v1078 = vsel %vm425, %v1058, %v1061
    %v1079 = vsel %vm434, %v1078, %v1064
    %v1080 = vsel %vm477, %v1079, %v957
    %v1081 = vsel %vm479, %v1080, %v1067
    %v1082 = vsel %vm1051, %v1081, %v1070
    %v1083 = vsel %vm1053, %v1082, %v1073
    %v1084 = vsel %vm1055, %v1083, %v1076
    %v1085 = vadd.f32 %v1056, 1e-12
    %v1086 = vrsqrt.pop %v1085
    %v1087 = vmul.f32 %v1086, %v1085
    %v1088 = vmul.f32 %v1087, %v1086
    %v1089 = vmul.f32 0.5, %v1088
    %v1090 = vsub.f32 1.5, %v1089
    %v1091 = vmul.f32 %v1086, %v1090
    %v1092 = vmul.f32 %v1085, %v1091
    %vm1093 = vcmp.eq.f32.partialorder %v1085, inf
    %v1094 = vsel %vm1093, %v1085, %v1092
    %vm1095 = vcmp.eq.f32.partialorder %v1085, 0.0
    %v1096 = vand.u32 %v1085, 2147483648
    %v1097 = vsel %vm1095, %v1096, %v1094
    %v1098 = vmul.f32 %v1056, 0.0625
    %v1099 = vsub.f32 1.0, %v1098
    %v1100 = vmax.f32 %v1099, 0.0
    %v1101 = vmul.f32 %v1100, %v1100
    %v1102 = vmul.f32 %v1084, %v1101
    %v1103 = vsub.f32 0.0, %v1097
    %v1104 = vmul.f32 %v1103, 1.442695
    %v1105 = vpow.pop %v1104
    %v1106 = vmul.f32 %v1102, %v1105
    %1107 = vadd.xlane.f32.xlu0 %v1106
    %v1108 = vpop.xlane.xlu0 %1107
    %1109 = vst [vmem:[#allocation10] sm:$0xff] %v1108
    // Predicated region
    $region38: #{tpu_custom_call.1} parent=1 // pred_check
      _
    $region39: #{tpu_custom_call.1} parent=1 // pred_check_branch
      %1111 = sbr.rel (0) target = $region41
    $region40: #{tpu_custom_call.1} parent=1 // pred_region
      %1113 = vsyncadd [#allocation4], 0
      %s1115 = sshll.u32 [#allocation10], 4
      %s1116 = int_to_ptr.vmem [resolvable:$true] %s1115
      %s1117 = sshll.u32 %s5, 4
      %s1118 = int_to_ptr.hbm [resolvable:$true] %s1117
      %1120 = dma.vmem_to_hbm [thread:$0]  %s1116, 128, %s1118, [#allocation4]
    $region41: #{tpu_custom_call.1} parent=1 // pred_fallthru
      _
    // Predicated region
    $region42: #{tpu_custom_call.1} parent=1 // pred_check
      _
    $region43: #{tpu_custom_call.1} parent=1 // pred_check_branch
      %1122 = sbr.rel (0) target = $region45
    $region44: #{tpu_custom_call.1} parent=1 // pred_region
      %1124 = dma.done [#allocation4], 128
    $region45: #{tpu_custom_call.1} parent=1 // pred_fallthru
      _
    %1125 = vsyncpa [#allocation3], 1
    %1126 = vsyncpa [#allocation8], 1
    %1127 = vsyncpa [#allocation4], 1
    %1128 = vsyncpa [#allocation5], 1

</llo_original>
